<compile_context>
chip_gen: v7x
topology: tpu7x:2x2x1
jax: 0.10.0
libtpu: 0.0.40
codegen_flags: <defaults>
</compile_context>

<pallas_src>
import math
import functools

import jax
import jax.numpy as jnp
from jax import lax
from jax.experimental import pallas as pl
from jax.experimental.pallas import tpu as pltpu


# ----------------------------------------------------------------------------
# Tiling configuration
# ----------------------------------------------------------------------------
# tm=tn=512, tk=512 -> projection working set ~6 MiB (x, W, f32 acc, out, double
# buffered), far under every generation's VMEM while giving ~256 FLOP/byte AI
# (vs 128 at 256x256).  Attention: tq=512 halves K/V re-stream traffic vs 256,
# tkv=256 keeps the per-step score matrix and scratch modest on v7x (64 MiB).
_TM = 512          # rows (batch*seq) per projection tile
_TN = 512          # output-feature tile for projections
_TK = 512          # contraction (d_model) tile for projections
_TQ = 512          # query-sequence tile for attention
_TKV = 256         # key/value-sequence tile for attention (streamed, online softmax)
_VMEM_LIMIT = 48 * 1024 * 1024   # headroom below v7x's 64 MiB physical VMEM


def _pick_tile(dim_size, preferred, align):
    """Largest tile <= preferred that evenly divides dim_size AND is a multiple of
    `align` (sublane/lane granularity).  Falls back to the full extent, which is
    always a legal block shape (avoids masked / rejected odd-sized tiles)."""
    if dim_size <= preferred:
        return dim_size
    for t in range(preferred, 0, -1):
        if dim_size % t == 0 and t % align == 0:
            return t
    return dim_size


# ----------------------------------------------------------------------------
# Generic tiled linear: grid (M-tiles, N-tiles, K-tiles), f32 VMEM accumulator
# along the contraction axis.  Used for Q / K / V / Output projections.
# ----------------------------------------------------------------------------
def _linear_kernel(x_ref, w_ref, b_ref, o_ref, acc_ref):
    k_step = pl.program_id(2)

    @pl.when(k_step == 0)
    def _init():
        acc_ref[...] = jnp.zeros_like(acc_ref)

    acc_ref[...] += jnp.dot(x_ref[...], w_ref[...],
                            preferred_element_type=jnp.float32)

    @pl.when(k_step == pl.num_programs(2) - 1)
    def _finalize():
        o_ref[...] = (acc_ref[...] + b_ref[...]).astype(o_ref.dtype)


def pallas_linear(x2d, w, b, out_dtype):
    """x2d: (M, d_in) in compute dtype, w: (d_in, d_out), b: (d_out,) f32 -> (M, d_out)."""
    m, d_in = x2d.shape
    n = w.shape[1]
    tm = _pick_tile(m, _TM, 8)       # NOTE: bf16 packs 16 rows/vreg; 8 keeps it general
    tn = _pick_tile(n, _TN, 128)
    tk = _pick_tile(d_in, _TK, 128)
    grid = (m // tm, n // tn, d_in // tk)
    return pl.pallas_call(
        _linear_kernel,
        out_shape=jax.ShapeDtypeStruct((m, n), out_dtype),
        grid_spec=pltpu.PrefetchScalarGridSpec(
            num_scalar_prefetch=0,
            grid=grid,
            in_specs=[
                pl.BlockSpec((tm, tk), lambda i, j, k: (i, k)),
                pl.BlockSpec((tk, tn), lambda i, j, k: (k, j)),
                pl.BlockSpec((1, tn), lambda i, j, k: (0, j)),
            ],
            out_specs=pl.BlockSpec((tm, tn), lambda i, j, k: (i, j)),
            scratch_shapes=[pltpu.VMEM((tm, tn), jnp.float32)],
        ),
        compiler_params=pltpu.CompilerParams(
            dimension_semantics=("parallel", "parallel", "arbitrary"),
            vmem_limit_bytes=_VMEM_LIMIT,
        ),
    )(x2d, w, b.reshape(1, n))


# ----------------------------------------------------------------------------
# Grouped (GQA) flash attention: grid (B, q-tiles, kv-tiles), online softmax.
# Per kv step: ONE Q@K^T and ONE P@V matmul per GROUP (heads stacked along rows).
# K/V are read once per (b, q-tile, kv-tile) and shared by all heads of a group.
# ----------------------------------------------------------------------------
def _flash_gqa_kernel(q_ref, k_ref, v_ref, o_ref,
                      qstk_ref, acc_ref, m_ref, l_ref,
                      *, num_heads, num_groups, head_dim, scale):
    heads_per_group = num_heads // num_groups
    tq = q_ref.shape[1]
    kv_step = pl.program_id(2)

    @pl.when(kv_step == 0)
    def _init():
        m_ref[...] = jnp.full_like(m_ref, -jnp.inf)
        l_ref[...] = jnp.zeros_like(l_ref)
        acc_ref[...] = jnp.zeros_like(acc_ref)
        # Stack each group's heads along rows ONCE per q-tile (reused for every kv
        # step) and fold the 1/sqrt(dim) scale into Q here: scaling a (tq, dim)
        # operand instead of the (hpg*tq, tkv) score matrix on every kv step.
        q = q_ref[0]                                   # (tq, num_heads*dim)
        for g in range(num_groups):
            for j in range(heads_per_group):
                h = g * heads_per_group + j
                qstk_ref[g, j * tq:(j + 1) * tq, :] = (
                    q[:, h * head_dim:(h + 1) * head_dim] * scale)

    k = k_ref[0]                                       # (tkv, num_groups*dim)
    v = v_ref[0]                                       # (tkv, num_groups*dim)

    for g in range(num_groups):
        k_g = k[:, g * head_dim:(g + 1) * head_dim]    # (tkv, dim)
        v_g = v[:, g * head_dim:(g + 1) * head_dim]    # (tkv, dim)
        q_g = qstk_ref[g, :, :]                        # (hpg*tq, dim)

        # Single batched Q@K^T per group; contract last dims (no K transpose).
        s = lax.dot_general(q_g, k_g, (((1,), (1,)), ((), ())),
                            preferred_element_type=jnp.float32)   # (hpg*tq, tkv)

        m_prev = m_ref[g, :, :]                                   # (hpg*tq, 1)
        m_new = jnp.maximum(m_prev, jnp.max(s, axis=-1, keepdims=True))
        alpha = jnp.exp(m_prev - m_new)
        p = jnp.exp(s - m_new)                                    # f32
        l_ref[g, :, :] = alpha * l_ref[g, :, :] + jnp.sum(p, axis=-1, keepdims=True)
        acc_ref[g, :, :] = alpha * acc_ref[g, :, :] + jnp.dot(
            p.astype(v_g.dtype), v_g, preferred_element_type=jnp.float32)
        m_ref[g, :, :] = m_new

    @pl.when(kv_step == pl.num_programs(2) - 1)
    def _finalize():
        # Exact reciprocal on the strict f32 path; EUP approx on the bf16 path.
        use_approx = o_ref.dtype != jnp.float32
        # Write directly in the merged-head (B, S, d_model) layout.
        for g in range(num_groups):
            inv_l = pl.reciprocal(l_ref[g, :, :], approx=use_approx)  # (hpg*tq, 1)
            for j in range(heads_per_group):
                h = g * heads_per_group + j
                o_ref[0, :, h * head_dim:(h + 1) * head_dim] = (
                    acc_ref[g, j * tq:(j + 1) * tq, :]
                    * inv_l[j * tq:(j + 1) * tq, :]).astype(o_ref.dtype)


def pallas_group_attention(q_bsd, k_bsd, v_bsd, num_heads, num_groups, head_dim):
    """q: (B, S, num_heads*dim), k/v: (B, S, num_groups*dim) -> (B, S, num_heads*dim)."""
    b, s, dm = q_bsd.shape
    gk = k_bsd.shape[-1]
    heads_per_group = num_heads // num_groups
    tq = _pick_tile(s, _TQ, 8)
    tkv = _pick_tile(s, _TKV, 8)
    kernel = functools.partial(
        _flash_gqa_kernel, num_heads=num_heads, num_groups=num_groups,
        head_dim=head_dim, scale=1.0 / math.sqrt(head_dim))
    return pl.pallas_call(
        kernel,
        out_shape=jax.ShapeDtypeStruct((b, s, dm), q_bsd.dtype),
        grid_spec=pltpu.PrefetchScalarGridSpec(
            num_scalar_prefetch=0,
            grid=(b, s // tq, s // tkv),
            in_specs=[
                pl.BlockSpec((1, tq, dm), lambda bi, qi, ki: (bi, qi, 0)),
                pl.BlockSpec((1, tkv, gk), lambda bi, qi, ki: (bi, ki, 0)),
                pl.BlockSpec((1, tkv, gk), lambda bi, qi, ki: (bi, ki, 0)),
            ],
            out_specs=pl.BlockSpec((1, tq, dm), lambda bi, qi, ki: (bi, qi, 0)),
            scratch_shapes=[
                pltpu.VMEM((num_groups, heads_per_group * tq, head_dim),
                           q_bsd.dtype),                                  # stacked Q
                pltpu.VMEM((num_groups, heads_per_group * tq, head_dim),
                           jnp.float32),                                  # running acc
                pltpu.VMEM((num_groups, heads_per_group * tq, 1), jnp.float32),  # max
                pltpu.VMEM((num_groups, heads_per_group * tq, 1), jnp.float32),  # sum
            ],
        ),
        compiler_params=pltpu.CompilerParams(
            dimension_semantics=("parallel", "parallel", "arbitrary"),
            vmem_limit_bytes=_VMEM_LIMIT,
        ),
    )(q_bsd, k_bsd, v_bsd)


# ----------------------------------------------------------------------------
# GroupAttention module (forward pass; dropout_rate=None, attention_mask=None)
# ----------------------------------------------------------------------------
# TODO(synk): attention_mask / dropout paths of the PyTorch module are not implemented
# (both are None/disabled in this forward pass).
class GroupAttentionPallas:
    def __init__(self, d_model, num_heads, num_groups, key, compute_dtype=jnp.bfloat16):
        assert d_model % num_heads == 0
        assert num_heads % num_groups == 0
        self.d_model = d_model
        self.num_heads = num_heads
        self.num_groups = num_groups
        self.dim = d_model // num_heads
        self.q_num_heads_per_group = num_heads // num_groups
        self.compute_dtype = compute_dtype

        def init_linear(k, d_in, d_out):
            # Matches torch.nn.Linear default: U(-1/sqrt(d_in), 1/sqrt(d_in)).
            kw, kb = jax.random.split(k)
            bound = 1.0 / math.sqrt(d_in)
            w = jax.random.uniform(kw, (d_in, d_out), jnp.float32, -bound, bound)
            bvec = jax.random.uniform(kb, (d_out,), jnp.float32, -bound, bound)
            # Weights stored in the MXU compute dtype (halves weight HBM traffic);
            # biases stay f32 (added onto the f32 accumulator).
            return w.astype(compute_dtype), bvec

        k1, k2, k3, k4 = jax.random.split(key, 4)
        kv_out = self.dim * num_groups
        self.Wk, self.bk = init_linear(k1, d_model, kv_out)
        self.Wv, self.bv = init_linear(k2, d_model, kv_out)
        self.Wq, self.bq = init_linear(k3, d_model, d_model)
        self.Wo, self.bo = init_linear(k4, d_model, d_model)

    def __call__(self, query, key, value):
        # query/key/value: (B, S, d_model), float32
        b, s, d = query.shape
        assert d == self.d_model
        cdt = self.compute_dtype

        # Cast activations to the compute dtype in the wrapper (halves activation HBM
        # reads for bf16; no-op for f32) and flatten (B, S) -> rows.
        qx = query.astype(cdt).reshape(b * s, d)
        kx = key.astype(cdt).reshape(b * s, d)
        vx = value.astype(cdt).reshape(b * s, d)

        # Fully (M, N, K)-tiled projections: VMEM footprint independent of d_model.
        Q2 = pallas_linear(qx, self.Wq, self.bq, out_dtype=cdt)
        K2 = pallas_linear(kx, self.Wk, self.bk, out_dtype=cdt)
        V2 = pallas_linear(vx, self.Wv, self.bv, out_dtype=cdt)

        # Keep the raw projection layouts (no transposes anywhere).
        Q = Q2.reshape(b, s, self.d_model)                      # (B, S, H*dim)
        K = K2.reshape(b, s, self.num_groups * self.dim)        # (B, S, G*dim)
        V = V2.reshape(b, s, self.num_groups * self.dim)        # (B, S, G*dim)

        # Flash-style grouped attention, output already in (B, S, d_model).
        attn = pallas_group_attention(Q, K, V, self.num_heads, self.num_groups, self.dim)

        # Output projection (f32 result).
        out = pallas_linear(attn.reshape(b * s, self.d_model), self.Wo, self.bo,
                            out_dtype=jnp.float32)
        return out.reshape(b, s, self.d_model)


# ----------------------------------------------------------------------------
# Pure JAX reference (mirrors the PyTorch forward) for validation
# ----------------------------------------------------------------------------
def reference_forward(mod, query, key, value):
    b, s, d = query.shape
    Wk = mod.Wk.astype(jnp.float32); Wv = mod.Wv.astype(jnp.float32)
    Wq = mod.Wq.astype(jnp.float32); Wo = mod.Wo.astype(jnp.float32)
    K = key @ Wk + mod.bk
    V = value @ Wv + mod.bv
    Q = query @ Wq + mod.bq
    Q = Q.reshape(b, s, mod.num_heads, mod.dim).transpose(0, 2, 1, 3)
    K = K.reshape(b, s, mod.num_groups, mod.dim).transpose(0, 2, 1, 3)
    V = V.reshape(b, s, mod.num_groups, mod.dim).transpose(0, 2, 1, 3)
    K = jnp.repeat(K, mod.q_num_heads_per_group, axis=1)
    V = jnp.repeat(V, mod.q_num_heads_per_group, axis=1)
    scores = jnp.einsum("bhqd,bhkd->bhqk", Q, K) / math.sqrt(mod.dim)
    w = jax.nn.softmax(scores, axis=-1)
    o = jnp.einsum("bhqk,bhkd->bhqd", w, V)
    o = o.transpose(0, 2, 1, 3).reshape(b, s, mod.d_model)
    return o @ Wo + mod.bo


if __name__ == "__main__":
    B, S, D_MODEL = 2, 8, 32
    NUM_HEADS, NUM_GROUPS = 4, 2

    root = jax.random.PRNGKey(0)
    kp, kq, kk, kv = jax.random.split(root, 4)
    query = jax.random.normal(kq, (B, S, D_MODEL), jnp.float32)
    key = jax.random.normal(kk, (B, S, D_MODEL), jnp.float32)
    value = jax.random.normal(kv, (B, S, D_MODEL), jnp.float32)

    # 1) f32 compute path: tight check of kernel structure / GQA indexing / softmax.
    mod_f32 = GroupAttentionPallas(D_MODEL, NUM_HEADS, NUM_GROUPS, kp,
                                   compute_dtype=jnp.float32)
    out_f32 = jax.block_until_ready(mod_f32(query, key, value))
    ref_f32 = reference_forward(mod_f32, query, key, value)
    assert out_f32.shape == (B, S, D_MODEL)
    assert jnp.allclose(out_f32, ref_f32, atol=2e-3, rtol=2e-3), "f32 mismatch vs reference"

    # 2) bf16 compute path (MXU-native): looser tolerance for bf16 rounding.
    mod_bf16 = GroupAttentionPallas(D_MODEL, NUM_HEADS, NUM_GROUPS, kp,
                                    compute_dtype=jnp.bfloat16)
    out_bf16 = jax.block_until_ready(mod_bf16(query, key, value))
    ref_bf16 = reference_forward(mod_bf16, query, key, value)
    assert out_bf16.shape == (B, S, D_MODEL)
    assert jnp.allclose(out_bf16, ref_bf16, atol=5e-2, rtol=5e-2), "bf16 mismatch vs reference"

    print("KERNEL_OK")
</pallas_src>

<mosaic_0001>
module attributes {stable_mosaic.version = 11 : i64} {
  func.func @_linear_kernel(%arg0: i32, %arg1: i32, %arg2: i32, %arg3: memref<16x32xf32, #tpu.memory_space<vmem>>, %arg4: memref<32x32xf32, #tpu.memory_space<vmem>>, %arg5: memref<1x32xf32, #tpu.memory_space<vmem>>, %arg6: memref<16x32xf32, #tpu.memory_space<vmem>>, %arg7: memref<16x32xf32, #tpu.memory_space<vmem>>) attributes {dimension_semantics = [#tpu.dimension_semantics<parallel>, #tpu.dimension_semantics<parallel>, #tpu.dimension_semantics<arbitrary>], iteration_bounds = array<i64: 1, 1, 1>, scalar_prefetch = 0 : i64, scratch_operands = 1 : i64, tpu.core_type = #tpu.core_type<tc>, window_params = [{transform_indices = @transform_0, window_bounds = array<i64: 16, 32>}, {transform_indices = @transform_1, window_bounds = array<i64: 32, 32>}, {transform_indices = @transform_2, window_bounds = array<i64: 1, 32>}, {transform_indices = @transform_3, window_bounds = array<i64: 16, 32>}]} {
    %c0_i32 = arith.constant 0 : i32
    %0 = arith.cmpi eq, %arg2, %c0_i32 : i32
    %1 = arith.extui %0 : i1 to i32
    %c0_i32_0 = arith.constant 0 : i32
    %2 = arith.cmpi ne, %1, %c0_i32_0 : i32
    scf.if %2 {
      %cst_10 = arith.constant 0.000000e+00 : f32
      %12 = vector.broadcast %cst_10 : f32 to vector<16x32xf32>
      %c0_11 = arith.constant 0 : index
      %c0_12 = arith.constant 0 : index
      %13 = vector.load %arg7[%c0_11, %c0_12] : memref<16x32xf32, #tpu.memory_space<vmem>>, vector<16x32xf32>
      tpu.vector_store %arg7[%c0_11, %c0_12], %12 {strides = array<i32>} : memref<16x32xf32, #tpu.memory_space<vmem>>, vector<16x32xf32>,
    } else {
    }
    %c0 = arith.constant 0 : index
    %c0_1 = arith.constant 0 : index
    %3 = vector.load %arg7[%c0, %c0_1] : memref<16x32xf32, #tpu.memory_space<vmem>>, vector<16x32xf32>
    %c0_2 = arith.constant 0 : index
    %c0_3 = arith.constant 0 : index
    %4 = vector.load %arg3[%c0_2, %c0_3] : memref<16x32xf32, #tpu.memory_space<vmem>>, vector<16x32xf32>
    %c0_4 = arith.constant 0 : index
    %c0_5 = arith.constant 0 : index
    %5 = vector.load %arg4[%c0_4, %c0_5] : memref<32x32xf32, #tpu.memory_space<vmem>>, vector<32x32xf32>
    %cst = arith.constant dense<0.000000e+00> : vector<16x32xf32>
    %6 = tpu.matmul %4, %5, %cst {dimension_numbers = #tpu.dot_dimension_numbers<[1], [0], [0], [1], [0, 0, 1, 1], [], []>} : vector<16x32xf32>, vector<32x32xf32>, vector<16x32xf32> -> vector<16x32xf32>
    %7 = arith.addf %3, %6 : vector<16x32xf32>
    %c0_6 = arith.constant 0 : index
    %c0_7 = arith.constant 0 : index
    %8 = vector.load %arg7[%c0_6, %c0_7] : memref<16x32xf32, #tpu.memory_space<vmem>>, vector<16x32xf32>
    tpu.vector_store %arg7[%c0_6, %c0_7], %7 {strides = array<i32>} : memref<16x32xf32, #tpu.memory_space<vmem>>, vector<16x32xf32>,
    %c0_i32_8 = arith.constant 0 : i32
    %9 = arith.cmpi eq, %arg2, %c0_i32_8 : i32
    %10 = arith.extui %9 : i1 to i32
    %c0_i32_9 = arith.constant 0 : i32
    %11 = arith.cmpi ne, %10, %c0_i32_9 : i32
    scf.if %11 {
      %c0_10 = arith.constant 0 : index
      %c0_11 = arith.constant 0 : index
      %12 = vector.load %arg7[%c0_10, %c0_11] : memref<16x32xf32, #tpu.memory_space<vmem>>, vector<16x32xf32>
      %c0_12 = arith.constant 0 : index
      %c0_13 = arith.constant 0 : index
      %13 = vector.load %arg5[%c0_12, %c0_13] : memref<1x32xf32, #tpu.memory_space<vmem>>, vector<1x32xf32>
      %14 = vector.broadcast %13 : vector<1x32xf32> to vector<16x32xf32>
      %15 = arith.addf %12, %14 : vector<16x32xf32>
      %c0_14 = arith.constant 0 : index
      %c0_15 = arith.constant 0 : index
      %16 = vector.load %arg6[%c0_14, %c0_15] : memref<16x32xf32, #tpu.memory_space<vmem>>, vector<16x32xf32>
      tpu.vector_store %arg6[%c0_14, %c0_15], %15 {strides = array<i32>} : memref<16x32xf32, #tpu.memory_space<vmem>>, vector<16x32xf32>,
    } else {
    }
    return
  }
  func.func @transform_0(%arg0: i32, %arg1: i32, %arg2: i32) -> (i32, i32) {
    %c0_i32 = arith.constant 0 : i32
    return %arg0, %arg2 : i32, i32
  }
  func.func @transform_1(%arg0: i32, %arg1: i32, %arg2: i32) -> (i32, i32) {
    %c0_i32 = arith.constant 0 : i32
    return %arg2, %arg1 : i32, i32
  }
  func.func @transform_2(%arg0: i32, %arg1: i32, %arg2: i32) -> (i32, i32) {
    %c0_i32 = arith.constant 0 : i32
    %c0_i32_0 = arith.constant 0 : i32
    return %c0_i32, %arg1 : i32, i32
  }
  func.func @transform_3(%arg0: i32, %arg1: i32, %arg2: i32) -> (i32, i32) {
    %c0_i32 = arith.constant 0 : i32
    return %arg0, %arg1 : i32, i32
  }
}

</mosaic_0001>

<llo_original>
// kernel: tpu_custom_call.1
$region0: #{tpu_custom_call.1}
  #allocation0 [shape = 'u32[]', space=smem, size = 0x4, offset = 0x4, fixed_abs, tag = 'smem constant byte address 0x4 - core index']
  #allocation1 [shape = 'u32[144,128]{1,0:T(1,128)}', space=vmem, size = 0x12000, scoped, tag = 'internal scratch']
  #allocation2 [shape = 'f32[16,32]{1,0:T(8,128)}', space=vmem, size = 0x2000, scoped, tag = 'scratch operand']
  %s0 = inlined_call_operand.hbm [shape: f32[16,32], index: 0, kind: input, shape index: {}]
  %s1 = inlined_call_operand.hbm [shape: f32[32,32], index: 1, kind: input, shape index: {}]
  %s2 = inlined_call_operand.vmem [shape: f32[1,32], index: 2, kind: input, shape index: {}]
  %s3 = inlined_call_operand.hbm [shape: f32[16,32], index: 3, kind: output, shape index: {}]
  %s4 = sld [smem:[#allocation0]]
  $region38: #{tpu_custom_call.1} parent=0
    _
  %s6 = ssub.s32 1, %s4
  %s7 = scalar_select 0, %s6, %s4
  $region1: #{tpu_custom_call.1} parent=0
    #allocation3 [shape = 'u8[8192]{0}', space=vmem, size = 0x2000, scoped, tag = 'input window, operand 0, single buffered']
    #allocation4 [shape = 's32[1]{0}', space=sflag, size = 0x4, scoped, tag = 'scoped memory for tpu_custom_call.1']
    #allocation5 [shape = 's32[1]{0}', space=sflag, size = 0x4, scoped, tag = 'scoped memory for tpu_custom_call.1']
    #allocation6 [shape = 'u8[16384]{0}', space=vmem, size = 0x4000, scoped, tag = 'input window, operand 1, single buffered']
    #allocation7 [shape = 's32[1]{0}', space=sflag, size = 0x4, scoped, tag = 'scoped memory for tpu_custom_call.1']
    #allocation8 [shape = 'u8[8192]{0}', space=vmem, size = 0x2000, scoped, tag = 'output window, operand 0, single buffered']
    %8 = vsyncpa [#allocation4], 0
    %9 = vsyncpa [#allocation7], 0
    %10 = vsyncpa [#allocation5], 0
    // Predicated region
    $region2: #{tpu_custom_call.1} parent=1 // pred_check
      _
    $region3: #{tpu_custom_call.1} parent=1 // pred_check_branch
      %12 = sbr.rel (0) target = $region5
    $region4: #{tpu_custom_call.1} parent=1 // pred_region
      %s14 = ssub.s32 256, 256
      %15 = vsyncadd [#allocation4], %s14
      %s16 = sshll.u32 [#allocation3], 4
      %s17 = int_to_ptr.vmem [resolvable:$true] %s16
      %22 = dma.hbm_to_vmem [thread:$0]  %s0, 256, %s17, [#allocation4], 128, 128, 8
    $region5: #{tpu_custom_call.1} parent=1 // pred_fallthru
      _
    // Predicated region
    $region6: #{tpu_custom_call.1} parent=1 // pred_check
      _
    $region7: #{tpu_custom_call.1} parent=1 // pred_check_branch
      %24 = sbr.rel (0) target = $region9
    $region8: #{tpu_custom_call.1} parent=1 // pred_region
      %s26 = ssub.s32 512, 512
      %27 = vsyncadd [#allocation7], %s26
      %s28 = sshll.u32 [#allocation6], 4
      %s29 = int_to_ptr.vmem [resolvable:$true] %s28
      %34 = dma.hbm_to_vmem [thread:$0]  %s1, 512, %s29, [#allocation7], 128, 128, 8
    $region9: #{tpu_custom_call.1} parent=1 // pred_fallthru
      _
    // Predicated region
    $region10: #{tpu_custom_call.1} parent=1 // pred_check
      _
    $region11: #{tpu_custom_call.1} parent=1 // pred_check_branch
      %36 = sbr.rel (0) target = $region13
    $region12: #{tpu_custom_call.1} parent=1 // pred_region
      _
    $region13: #{tpu_custom_call.1} parent=1 // pred_fallthru
      _
    // Predicated region
    $region14: #{tpu_custom_call.1} parent=1 // pred_check
      _
    $region15: #{tpu_custom_call.1} parent=1 // pred_check_branch
      %38 = sbr.rel (0) target = $region17
    $region16: #{tpu_custom_call.1} parent=1 // pred_region
      %39 = dma.done [#allocation4], 256
    $region17: #{tpu_custom_call.1} parent=1 // pred_fallthru
      _
    // Predicated region
    $region18: #{tpu_custom_call.1} parent=1 // pred_check
      _
    $region19: #{tpu_custom_call.1} parent=1 // pred_check_branch
      %41 = sbr.rel (0) target = $region21
    $region20: #{tpu_custom_call.1} parent=1 // pred_region
      %42 = dma.done [#allocation7], 512
    $region21: #{tpu_custom_call.1} parent=1 // pred_fallthru
      _
    %p43 = scmp.eq.s32.totalorder 0, 0
    // Predicated region
    $region22: #{tpu_custom_call.1} parent=1 // pred_check
      %p44 = pneg %p43
    $region23: #{tpu_custom_call.1} parent=1 // pred_check_branch
      %46 = sbr.rel (%p44) target = $region25
    $region24: #{tpu_custom_call.1} parent=1 // pred_region
      %vm47 = vcmask 261120
      %48 = vst.msk [vmem:[#allocation2] sm:$0xff] %vm47, 0.0
      %49 = vst.msk [vmem:[#allocation2 + $0x8] sm:$0xff] %vm47, 0.0
    $region25: #{tpu_custom_call.1} parent=1 // pred_fallthru
      _
    %v50 = vld [vmem:[#allocation2] sm:$0xff]
    %v51 = vld [vmem:[#allocation2 + $0x8] sm:$0xff]
    %v52 = vld [vmem:[#allocation3] sm:$0xff]
    %v53 = vld [vmem:[#allocation3 + $0x8] sm:$0xff]
    %v54 = vld [vmem:[#allocation6] sm:$0xff]
    %v55 = vld [vmem:[#allocation6 + $0x8] sm:$0xff]
    %v56 = vld [vmem:[#allocation6 + $0x10] sm:$0xff]
    %v57 = vld [vmem:[#allocation6 + $0x18] sm:$0xff]
    %vm58 = vcmask 261120
    %v60 = vsel %vm58, %v52, 0
    %v63 = vsel %vm58, %v53, 0
    %65 = vmatprep.subr.mxu0 0.0
    %66 = vmatpush1.msra.mxu0 %v54
    %67 = vmatprep.subr.mxu0 0.0
    %68 = vmatpush1.msra.mxu0 %v55
    %69 = vmatprep.subr.mxu0 0.0
    %70 = vmatpush1.msra.mxu0 %v56
    %71 = vmatprep.subr.mxu0 0.0
    %72 = vmatpush1.msra.mxu0 %v57
    %73 = vmatprep.subr.mxu0 0.0
    %74 = vmatpush1.msra.mxu0 0.0
    %75 = vmatprep.subr.mxu0 0.0
    %76 = vmatpush1.msra.mxu0 0.0
    %77 = vmatprep.subr.mxu0 0.0
    %78 = vmatpush1.msra.mxu0 0.0
    %79 = vmatprep.subr.mxu0 0.0
    %80 = vmatpush1.msra.mxu0 0.0
    %81 = vmatprep.subr.mxu0 0.0
    %82 = vmatpush1.msra.mxu0 0.0
    %83 = vmatprep.subr.mxu0 0.0
    %84 = vmatpush1.msra.mxu0 0.0
    %85 = vmatprep.subr.mxu0 0.0
    %86 = vmatpush1.msra.mxu0 0.0
    %87 = vmatprep.subr.mxu0 0.0
    %88 = vmatpush1.msra.mxu0 0.0
    %89 = vmatprep.subr.mxu0 0.0
    %90 = vmatpush1.msra.mxu0 0.0
    %91 = vmatprep.subr.mxu0 0.0
    %92 = vmatpush1.msra.mxu0 0.0
    %93 = vmatprep.subr.mxu0 0.0
    %94 = vmatpush1.msra.mxu0 0.0
    %95 = vmatprep.subr.mxu0 0.0
    %96 = vmatpush1.msra.mxu0 0.0
    %97 = vmatprep.subr.mxu0 0.0
    %98 = vmatpush1.msra.mxu0 0.0
    %99 = vmatprep.subr.mxu0 0.0
    %100 = vmatpush1.msra.mxu0 0.0
    %101 = vmatprep.subr.mxu0 0.0
    %102 = vmatpush1.msra.mxu0 0.0
    %103 = vmatprep.subr.mxu0 0.0
    %104 = vmatpush1.msra.mxu0 0.0
    %105 = vmatprep.subr.mxu0 0.0
    %106 = vmatpush1.msra.mxu0 0.0
    %107 = vmatprep.subr.mxu0 0.0
    %108 = vmatpush1.msra.mxu0 0.0
    %109 = vmatprep.subr.mxu0 0.0
    %110 = vmatpush1.msra.mxu0 0.0
    %111 = vmatprep.subr.mxu0 0.0
    %112 = vmatpush1.msra.mxu0 0.0
    %113 = vmatprep.subr.mxu0 0.0
    %114 = vmatpush1.msra.mxu0 0.0
    %115 = vmatprep.subr.mxu0 0.0
    %116 = vmatpush1.msra.mxu0 0.0
    %117 = vmatprep.subr.mxu0 0.0
    %118 = vmatpush1.msra.mxu0 0.0
    %119 = vmatprep.subr.mxu0 0.0
    %120 = vmatpush1.msra.mxu0 0.0
    %121 = vmatprep.subr.mxu0 0.0
    %122 = vmatpush1.msra.mxu0 0.0
    %123 = vmatprep.subr.mxu0 0.0
    %124 = vmatpush1.msra.mxu0 0.0
    %125 = vmatprep.subr.mxu0 0.0
    %126 = vmatpush1.msra.mxu0 0.0
    %127 = vmatprep.subr.mxu0 0.0
    %128 = vmatpush1.msra.mxu0 0.0
    %129 = vmatprep.mubr.f32.mxu0 0.0
    %130 = vmatmul.mubr.f32.gmra.mrb[0].mxu0 %v60
    %v131 = vpop.f32.mrb[0].mxu0
    %v132 = vadd.f32 0.0, %v131
    %v133 = vpop.f32.mrb[0].mxu0
    %134 = vmatprep.mubr.f32.mxu0 0.0
    %135 = vmatmul.mubr.f32.gmra.mrb[0].mxu0 %v63
    %v136 = vpop.f32.mrb[0].mxu0
    %v137 = vadd.f32 0.0, %v136
    %v138 = vpop.f32.mrb[0].mxu0
    %139 = vdwg.mxu0
    %v140 = vadd.f32 %v50, %v132
    %v141 = vadd.f32 %v51, %v137
    %142 = vst.msk [vmem:[#allocation2] sm:$0xff] %vm58, %v140
    %143 = vst.msk [vmem:[#allocation2 + $0x8] sm:$0xff] %vm58, %v141
    // Predicated region
    $region26: #{tpu_custom_call.1} parent=1 // pred_check
      %p144 = pneg %p43
    $region27: #{tpu_custom_call.1} parent=1 // pred_check_branch
      %146 = sbr.rel (%p144) target = $region29
    $region28: #{tpu_custom_call.1} parent=1 // pred_region
      %v147 = vld [vmem:[#allocation2] sm:$0xff]
      %v148 = vld [vmem:[#allocation2 + $0x8] sm:$0xff]
      %v149 = vld [vmem:[%s2] sm:$0x1]
      %v151 = vlaneseq
      %v152 = vshrl.u32 %v151, 7
      %v153 = vsub.s32 0, %v152
      %v154 = vrot.slane %v149, %v153
      %v156 = vadd.f32 %v147, %v154
      %v157 = vadd.f32 %v148, %v154
      %158 = vst.msk [vmem:[#allocation8] sm:$0xff] %vm58, %v156
      %159 = vst.msk [vmem:[#allocation8 + $0x8] sm:$0xff] %vm58, %v157
    $region29: #{tpu_custom_call.1} parent=1 // pred_fallthru
      _
    // Predicated region
    $region30: #{tpu_custom_call.1} parent=1 // pred_check
      _
    $region31: #{tpu_custom_call.1} parent=1 // pred_check_branch
      %161 = sbr.rel (0) target = $region33
    $region32: #{tpu_custom_call.1} parent=1 // pred_region
      %s163 = ssub.s32 256, 256
      %164 = vsyncadd [#allocation5], %s163
      %s165 = sshll.u32 [#allocation8], 4
      %s166 = int_to_ptr.vmem [resolvable:$true] %s165
      %171 = dma.vmem_to_hbm [thread:$0]  %s166, 256, %s3, [#allocation5], 128, 128, 8
    $region33: #{tpu_custom_call.1} parent=1 // pred_fallthru
      _
    // Predicated region
    $region34: #{tpu_custom_call.1} parent=1 // pred_check
      _
    $region35: #{tpu_custom_call.1} parent=1 // pred_check_branch
      %173 = sbr.rel (0) target = $region37
    $region36: #{tpu_custom_call.1} parent=1 // pred_region
      %174 = dma.done [#allocation5], 256
    $region37: #{tpu_custom_call.1} parent=1 // pred_fallthru
      _
    %175 = vsyncpa [#allocation4], 1
    %176 = vsyncpa [#allocation7], 1
    %177 = vsyncpa [#allocation5], 1

</llo_original>
